<compile_context>
chip_gen: v7x
topology: tpu7x:2x2x1
jax: 0.10.0
libtpu: 0.0.40
codegen_flags: <defaults>
</compile_context>

<pallas_src>
import functools

import jax
import jax.numpy as jnp
from jax import lax
from jax.experimental import pallas as pl
from jax.experimental.pallas import tpu as pltpu

IN_F, HID_F, OUT_F = 10, 20, 5


def mlp_kernel(x_ref, w1_ref, b1_ref, w2_ref, b2_ref, o_ref):
    # x_ref : (bt, 10)   w1_ref: (20, 10)  b1_ref: (1, 20)
    # w2_ref: (5, 20)    b2_ref: (1, 5)    o_ref : (bt, 5)
    x = x_ref[...]
    # Linear 1: x @ w1.T  (contract last dims on the MXU, f32 accumulation)
    h = lax.dot_general(
        x, w1_ref[...],
        dimension_numbers=(((1,), (1,)), ((), ())),
        preferred_element_type=jnp.float32,
    )
    h = jnp.maximum(h + b1_ref[...], 0.0)          # bias + ReLU on the VPU
    # Linear 2: h @ w2.T
    out = lax.dot_general(
        h, w2_ref[...],
        dimension_numbers=(((1,), (1,)), ((), ())),
        preferred_element_type=jnp.float32,
    )
    o_ref[...] = (out + b2_ref[...]).astype(o_ref.dtype)


def prepare_params(w1, b1, w2, b2):
    """One-time parameter prep. PyTorch layout (out_features, in_features) is
    consumed directly; biases get a leading broadcast dim. Call once, reuse."""
    return (w1, b1.reshape(1, HID_F), w2, b2.reshape(1, OUT_F))


def _choose_tile(B, block_b):
    """Pick the batch tile (sublane dim -> multiple of 8) and padded batch."""
    bt = min(block_b, max(B, 8))
    bt = max(8, (bt // 8) * 8)                     # defensive sublane alignment
    if B >= 256:
        # Ensure >= 2 grid steps so the "parallel" axis can use both v7x TCs.
        half = -(-((B + 1) // 2) // 8) * 8
        bt = min(bt, half)
    b_pad = -(-B // bt) * bt
    return bt, b_pad


@functools.partial(jax.jit, static_argnames=("block_b",))
def mlp_forward(x, params, block_b=4096):
    """x: (B, 10) row-major; params from prepare_params  -> (B, 5) row-major."""
    w1, b1r, w2, b2r = params
    B = x.shape[0]
    bt, b_pad = _choose_tile(B, block_b)
    grid = (b_pad // bt,)

    pad = b_pad - B
    x_in = jnp.pad(x, ((0, pad), (0, 0))) if pad else x

    cost = pl.CostEstimate(
        flops=2 * b_pad * (IN_F * HID_F + HID_F * OUT_F),
        transcendentals=0,
        bytes_accessed=x.dtype.itemsize * b_pad * (IN_F + OUT_F)
        + 4 * (HID_F * (IN_F + 1) + OUT_F * (HID_F + 1)),
    )

    out = pl.pallas_call(
        mlp_kernel,
        out_shape=jax.ShapeDtypeStruct((b_pad, OUT_F), x.dtype),
        grid=grid,
        in_specs=[
            pl.BlockSpec((bt, IN_F), lambda i: (i, 0)),      # x: blocked over batch
            pl.BlockSpec((HID_F, IN_F), lambda i: (0, 0)),   # w1: VMEM-resident
            pl.BlockSpec((1, HID_F), lambda i: (0, 0)),      # b1: VMEM-resident
            pl.BlockSpec((OUT_F, HID_F), lambda i: (0, 0)),  # w2: VMEM-resident
            pl.BlockSpec((1, OUT_F), lambda i: (0, 0)),      # b2: VMEM-resident
        ],
        out_specs=pl.BlockSpec((bt, OUT_F), lambda i: (i, 0)),
        compiler_params=pltpu.CompilerParams(
            dimension_semantics=("parallel",)),
        cost_estimate=cost,
    )(x_in, w1, b1r, w2, b2r)

    # Padded rows contain relu(b1) @ w2.T + b2 garbage; drop them.
    return out[:B] if pad else out


def init_params(key):
    """Deterministic init mimicking PyTorch nn.Linear default (U(+/- 1/sqrt(fan_in)))."""
    k1, k2, k3, k4 = jax.random.split(key, 4)
    bound1 = 1.0 / jnp.sqrt(float(IN_F))
    bound2 = 1.0 / jnp.sqrt(float(HID_F))
    w1 = jax.random.uniform(k1, (HID_F, IN_F), jnp.float32, -bound1, bound1)
    b1 = jax.random.uniform(k2, (HID_F,), jnp.float32, -bound1, bound1)
    w2 = jax.random.uniform(k3, (OUT_F, HID_F), jnp.float32, -bound2, bound2)
    b2 = jax.random.uniform(k4, (OUT_F,), jnp.float32, -bound2, bound2)
    return w1, b1, w2, b2


if __name__ == "__main__":
    key = jax.random.PRNGKey(0)
    k_x, k_p = jax.random.split(key)

    B = 8
    x = jax.random.normal(k_x, (B, IN_F), jnp.float32)
    w1, b1, w2, b2 = init_params(k_p)
    params = prepare_params(w1, b1, w2, b2)   # one-time prep, reused per call

    out = mlp_forward(x, params)
    jax.block_until_ready(out)

    # Reference check in plain JAX (matches the PyTorch module semantics).
    ref = jnp.maximum(x @ w1.T + b1, 0.0) @ w2.T + b2
    assert out.shape == (B, OUT_F)
    assert jnp.allclose(out, ref, atol=1e-5, rtol=1e-5), "mismatch vs reference"

    print("KERNEL_OK")
</pallas_src>

<mosaic_0001>
module attributes {stable_mosaic.version = 11 : i64} {
  func.func @mlp_kernel(%arg0: i32, %arg1: memref<8x10xf32, #tpu.memory_space<vmem>>, %arg2: memref<20x10xf32, #tpu.memory_space<vmem>>, %arg3: memref<1x20xf32, #tpu.memory_space<vmem>>, %arg4: memref<5x20xf32, #tpu.memory_space<vmem>>, %arg5: memref<1x5xf32, #tpu.memory_space<vmem>>, %arg6: memref<8x5xf32, #tpu.memory_space<vmem>>) attributes {dimension_semantics = [#tpu.dimension_semantics<parallel>], iteration_bounds = array<i64: 1>, scalar_prefetch = 0 : i64, scratch_operands = 0 : i64, tpu.core_type = #tpu.core_type<tc>, window_params = [{transform_indices = @transform_0, window_bounds = array<i64: 8, 10>}, {pipeline_mode = #tpu.pipeline_mode<synchronous>, transform_indices = @transform_1, window_bounds = array<i64: 20, 10>}, {pipeline_mode = #tpu.pipeline_mode<synchronous>, transform_indices = @transform_2, window_bounds = array<i64: 1, 20>}, {pipeline_mode = #tpu.pipeline_mode<synchronous>, transform_indices = @transform_3, window_bounds = array<i64: 5, 20>}, {pipeline_mode = #tpu.pipeline_mode<synchronous>, transform_indices = @transform_4, window_bounds = array<i64: 1, 5>}, {transform_indices = @transform_5, window_bounds = array<i64: 8, 5>}]} {
    %c0 = arith.constant 0 : index
    %c0_0 = arith.constant 0 : index
    %0 = vector.load %arg1[%c0, %c0_0] : memref<8x10xf32, #tpu.memory_space<vmem>>, vector<8x10xf32>
    %c0_1 = arith.constant 0 : index
    %c0_2 = arith.constant 0 : index
    %1 = vector.load %arg2[%c0_1, %c0_2] : memref<20x10xf32, #tpu.memory_space<vmem>>, vector<20x10xf32>
    %cst = arith.constant dense<0.000000e+00> : vector<8x20xf32>
    %2 = tpu.matmul %0, %1, %cst {dimension_numbers = #tpu.dot_dimension_numbers<[1], [1], [0], [0], [0, 0, 1, 0], [], []>} : vector<8x10xf32>, vector<20x10xf32>, vector<8x20xf32> -> vector<8x20xf32>
    %c0_3 = arith.constant 0 : index
    %c0_4 = arith.constant 0 : index
    %3 = vector.load %arg3[%c0_3, %c0_4] : memref<1x20xf32, #tpu.memory_space<vmem>>, vector<1x20xf32>
    %4 = vector.broadcast %3 : vector<1x20xf32> to vector<8x20xf32>
    %5 = arith.addf %2, %4 : vector<8x20xf32>
    %cst_5 = arith.constant 0.000000e+00 : f32
    %6 = vector.broadcast %cst_5 : f32 to vector<8x20xf32>
    %7 = arith.maximumf %5, %6 : vector<8x20xf32>
    %c0_6 = arith.constant 0 : index
    %c0_7 = arith.constant 0 : index
    %8 = vector.load %arg4[%c0_6, %c0_7] : memref<5x20xf32, #tpu.memory_space<vmem>>, vector<5x20xf32>
    %cst_8 = arith.constant dense<0.000000e+00> : vector<8x5xf32>
    %9 = tpu.matmul %7, %8, %cst_8 {dimension_numbers = #tpu.dot_dimension_numbers<[1], [1], [0], [0], [0, 0, 1, 0], [], []>} : vector<8x20xf32>, vector<5x20xf32>, vector<8x5xf32> -> vector<8x5xf32>
    %c0_9 = arith.constant 0 : index
    %c0_10 = arith.constant 0 : index
    %10 = vector.load %arg5[%c0_9, %c0_10] : memref<1x5xf32, #tpu.memory_space<vmem>>, vector<1x5xf32>
    %11 = vector.broadcast %10 : vector<1x5xf32> to vector<8x5xf32>
    %12 = arith.addf %9, %11 : vector<8x5xf32>
    %c0_11 = arith.constant 0 : index
    %c0_12 = arith.constant 0 : index
    %13 = vector.load %arg6[%c0_11, %c0_12] : memref<8x5xf32, #tpu.memory_space<vmem>>, vector<8x5xf32>
    tpu.vector_store %arg6[%c0_11, %c0_12], %12 {strides = array<i32>} : memref<8x5xf32, #tpu.memory_space<vmem>>, vector<8x5xf32>,
    return
  }
  func.func @transform_0(%arg0: i32) -> (i32, i32) {
    %c0_i32 = arith.constant 0 : i32
    %c0_i32_0 = arith.constant 0 : i32
    return %arg0, %c0_i32 : i32, i32
  }
  func.func @transform_1(%arg0: i32) -> (i32, i32) {
    %c0_i32 = arith.constant 0 : i32
    %c0_i32_0 = arith.constant 0 : i32
    %c0_i32_1 = arith.constant 0 : i32
    return %c0_i32, %c0_i32_0 : i32, i32
  }
  func.func @transform_2(%arg0: i32) -> (i32, i32) {
    %c0_i32 = arith.constant 0 : i32
    %c0_i32_0 = arith.constant 0 : i32
    %c0_i32_1 = arith.constant 0 : i32
    return %c0_i32, %c0_i32_0 : i32, i32
  }
  func.func @transform_3(%arg0: i32) -> (i32, i32) {
    %c0_i32 = arith.constant 0 : i32
    %c0_i32_0 = arith.constant 0 : i32
    %c0_i32_1 = arith.constant 0 : i32
    return %c0_i32, %c0_i32_0 : i32, i32
  }
  func.func @transform_4(%arg0: i32) -> (i32, i32) {
    %c0_i32 = arith.constant 0 : i32
    %c0_i32_0 = arith.constant 0 : i32
    %c0_i32_1 = arith.constant 0 : i32
    return %c0_i32, %c0_i32_0 : i32, i32
  }
  func.func @transform_5(%arg0: i32) -> (i32, i32) {
    %c0_i32 = arith.constant 0 : i32
    %c0_i32_0 = arith.constant 0 : i32
    return %arg0, %c0_i32 : i32, i32
  }
}

</mosaic_0001>

<llo_original>
// kernel: mlp_forward.1
$region0: #{mlp_forward.1}
  #allocation0 [shape = 'u32[]', space=smem, size = 0x4, offset = 0x4, fixed_abs, tag = 'smem constant byte address 0x4 - core index']
  #allocation1 [shape = 'u32[144,128]{1,0:T(1,128)}', space=vmem, size = 0x12000, scoped, tag = 'internal scratch']
  %s0 = inlined_call_operand.vmem [shape: f32[8,10], index: 0, kind: input, shape index: {}]
  %s1 = inlined_call_operand.vmem [shape: f32[20,10], index: 1, kind: input, shape index: {}]
  %s2 = inlined_call_operand.vmem [shape: f32[1,20], index: 2, kind: input, shape index: {}]
  %s3 = inlined_call_operand.vmem [shape: f32[5,20], index: 3, kind: input, shape index: {}]
  %s4 = inlined_call_operand.vmem [shape: f32[1,5], index: 4, kind: input, shape index: {}]
  %s5 = inlined_call_operand.hbm [shape: f32[8,5], index: 5, kind: output, shape index: {}]
  %s6 = sld [smem:[#allocation0]]
  $region30: #{mlp_forward.1} parent=0
    _
  %s8 = ssub.s32 1, %s6
  %s9 = scalar_select 0, %s8, %s6
  $region1: #{mlp_forward.1} parent=0
    #allocation2 [shape = 'u8[4096]{0}', space=vmem, size = 0x1000, scoped, tag = 'output window, operand 0, single buffered']
    #allocation3 [shape = 's32[1]{0}', space=sflag, size = 0x4, scoped, tag = 'scoped memory for mlp_forward.1']
    %10 = vsyncpa [#allocation3], 0
    // Predicated region
    $region2: #{mlp_forward.1} parent=1 // pred_check
      _
    $region3: #{mlp_forward.1} parent=1 // pred_check_branch
      %12 = sbr.rel (0) target = $region5
    $region4: #{mlp_forward.1} parent=1 // pred_region
      _
    $region5: #{mlp_forward.1} parent=1 // pred_fallthru
      _
    // Predicated region
    $region6: #{mlp_forward.1} parent=1 // pred_check
      _
    $region7: #{mlp_forward.1} parent=1 // pred_check_branch
      %14 = sbr.rel (0) target = $region9
    $region8: #{mlp_forward.1} parent=1 // pred_region
      _
    $region9: #{mlp_forward.1} parent=1 // pred_fallthru
      _
    // Predicated region
    $region10: #{mlp_forward.1} parent=1 // pred_check
      _
    $region11: #{mlp_forward.1} parent=1 // pred_check_branch
      %16 = sbr.rel (0) target = $region13
    $region12: #{mlp_forward.1} parent=1 // pred_region
      _
    $region13: #{mlp_forward.1} parent=1 // pred_fallthru
      _
    // Predicated region
    $region14: #{mlp_forward.1} parent=1 // pred_check
      _
    $region15: #{mlp_forward.1} parent=1 // pred_check_branch
      %18 = sbr.rel (0) target = $region17
    $region16: #{mlp_forward.1} parent=1 // pred_region
      _
    $region17: #{mlp_forward.1} parent=1 // pred_fallthru
      _
    // Predicated region
    $region18: #{mlp_forward.1} parent=1 // pred_check
      _
    $region19: #{mlp_forward.1} parent=1 // pred_check_branch
      %20 = sbr.rel (0) target = $region21
    $region20: #{mlp_forward.1} parent=1 // pred_region
      _
    $region21: #{mlp_forward.1} parent=1 // pred_fallthru
      _
    %v21 = vld [vmem:[%s0] sm:$0xff]
    %v22 = vld [vmem:[%s1] sm:$0xff]
    %v23 = vld [vmem:[%s1 + $0x8] sm:$0xff]
    %v24 = vld [vmem:[%s1 + $0x10] sm:$0xf]
    %v25 = vld [vmem:[%s2] sm:$0x1]
    %v27 = vlaneseq
    %v28 = vshrl.u32 %v27, 7
    %v29 = vsub.s32 0, %v28
    %v30 = vrot.slane %v25, %v29
    %vm32 = vcmask 80896
    %v34 = vsel %vm32, %v21, 0
    %v37 = vsel %vm32, %v22, 0
    %v40 = vsel %vm32, %v23, 0
    %v43 = vsel %vm32, %v24, 0
    %45 = vmatprep.subr.mxu0 0.0
    %46 = vmatpush1.xpose.msra.mxu0 %v37
    %47 = vmatprep.subr.mxu0 0.0
    %48 = vmatpush1.xpose.msra.mxu0 %v40
    %49 = vmatprep.subr.mxu0 0.0
    %50 = vmatpush1.xpose.msra.mxu0 %v43
    %51 = vmatprep.subr.mxu0 0.0
    %52 = vmatpush1.xpose.msra.mxu0 0.0
    %53 = vmatprep.subr.mxu0 0.0
    %54 = vmatpush1.xpose.msra.mxu0 0.0
    %55 = vmatprep.subr.mxu0 0.0
    %56 = vmatpush1.xpose.msra.mxu0 0.0
    %57 = vmatprep.subr.mxu0 0.0
    %58 = vmatpush1.xpose.msra.mxu0 0.0
    %59 = vmatprep.subr.mxu0 0.0
    %60 = vmatpush1.xpose.msra.mxu0 0.0
    %61 = vmatprep.subr.mxu0 0.0
    %62 = vmatpush1.xpose.msra.mxu0 0.0
    %63 = vmatprep.subr.mxu0 0.0
    %64 = vmatpush1.xpose.msra.mxu0 0.0
    %65 = vmatprep.subr.mxu0 0.0
    %66 = vmatpush1.xpose.msra.mxu0 0.0
    %67 = vmatprep.subr.mxu0 0.0
    %68 = vmatpush1.xpose.msra.mxu0 0.0
    %69 = vmatprep.subr.mxu0 0.0
    %70 = vmatpush1.xpose.msra.mxu0 0.0
    %71 = vmatprep.subr.mxu0 0.0
    %72 = vmatpush1.xpose.msra.mxu0 0.0
    %73 = vmatprep.subr.mxu0 0.0
    %74 = vmatpush1.xpose.msra.mxu0 0.0
    %75 = vmatprep.subr.mxu0 0.0
    %76 = vmatpush1.xpose.msra.mxu0 0.0
    %77 = vmatprep.subr.mxu0 0.0
    %78 = vmatpush1.xpose.msra.mxu0 0.0
    %79 = vmatprep.subr.mxu0 0.0
    %80 = vmatpush1.xpose.msra.mxu0 0.0
    %81 = vmatprep.subr.mxu0 0.0
    %82 = vmatpush1.xpose.msra.mxu0 0.0
    %83 = vmatprep.subr.mxu0 0.0
    %84 = vmatpush1.xpose.msra.mxu0 0.0
    %85 = vmatprep.subr.mxu0 0.0
    %86 = vmatpush1.xpose.msra.mxu0 0.0
    %87 = vmatprep.subr.mxu0 0.0
    %88 = vmatpush1.xpose.msra.mxu0 0.0
    %89 = vmatprep.subr.mxu0 0.0
    %90 = vmatpush1.xpose.msra.mxu0 0.0
    %91 = vmatprep.subr.mxu0 0.0
    %92 = vmatpush1.xpose.msra.mxu0 0.0
    %93 = vmatprep.subr.mxu0 0.0
    %94 = vmatpush1.xpose.msra.mxu0 0.0
    %95 = vmatprep.subr.mxu0 0.0
    %96 = vmatpush1.xpose.msra.mxu0 0.0
    %97 = vmatprep.subr.mxu0 0.0
    %98 = vmatpush1.xpose.msra.mxu0 0.0
    %99 = vmatprep.subr.mxu0 0.0
    %100 = vmatpush1.xpose.msra.mxu0 0.0
    %101 = vmatprep.subr.mxu0 0.0
    %102 = vmatpush1.xpose.msra.mxu0 0.0
    %103 = vmatprep.subr.mxu0 0.0
    %104 = vmatpush1.xpose.msra.mxu0 0.0
    %105 = vmatprep.subr.mxu0 0.0
    %106 = vmatpush1.xpose.msra.mxu0 0.0
    %107 = vmatprep.subr.mxu0 0.0
    %108 = vmatpush1.xpose.msra.mxu0 0.0
    %109 = vmatprep.mubr.f32.mxu0 0.0
    %110 = vmatmul.mubr.f32.gmra.mrb[0].mxu0 %v34
    %v111 = vpop.f32.mrb[0].mxu0
    %v112 = vadd.f32 %v30, %v111
    %v113 = vpop.f32.mrb[0].mxu0
    %114 = vdwg.mxu0
    %v115 = vmax.f32 %v112, 0.0
    %v116 = vld [vmem:[%s3] sm:$0x1f]
    %v117 = vld [vmem:[%s4] sm:$0x1]
    %v119 = vlaneseq
    %v120 = vshrl.u32 %v119, 7
    %v121 = vsub.s32 0, %v120
    %v122 = vrot.slane %v117, %v121
    %vm124 = vcmask 162816
    %v126 = vsel %vm124, %v115, 0
    %v129 = vsel %vm124, %v116, 0
    %131 = vmatprep.subr.mxu0 0.0
    %132 = vmatpush1.xpose.msra.mxu0 %v129
    %133 = vmatprep.subr.mxu0 0.0
    %134 = vmatpush1.xpose.msra.mxu0 0.0
    %135 = vmatprep.subr.mxu0 0.0
    %136 = vmatpush1.xpose.msra.mxu0 0.0
    %137 = vmatprep.subr.mxu0 0.0
    %138 = vmatpush1.xpose.msra.mxu0 0.0
    %139 = vmatprep.subr.mxu0 0.0
    %140 = vmatpush1.xpose.msra.mxu0 0.0
    %141 = vmatprep.subr.mxu0 0.0
    %142 = vmatpush1.xpose.msra.mxu0 0.0
    %143 = vmatprep.subr.mxu0 0.0
    %144 = vmatpush1.xpose.msra.mxu0 0.0
    %145 = vmatprep.subr.mxu0 0.0
    %146 = vmatpush1.xpose.msra.mxu0 0.0
    %147 = vmatprep.subr.mxu0 0.0
    %148 = vmatpush1.xpose.msra.mxu0 0.0
    %149 = vmatprep.subr.mxu0 0.0
    %150 = vmatpush1.xpose.msra.mxu0 0.0
    %151 = vmatprep.subr.mxu0 0.0
    %152 = vmatpush1.xpose.msra.mxu0 0.0
    %153 = vmatprep.subr.mxu0 0.0
    %154 = vmatpush1.xpose.msra.mxu0 0.0
    %155 = vmatprep.subr.mxu0 0.0
    %156 = vmatpush1.xpose.msra.mxu0 0.0
    %157 = vmatprep.subr.mxu0 0.0
    %158 = vmatpush1.xpose.msra.mxu0 0.0
    %159 = vmatprep.subr.mxu0 0.0
    %160 = vmatpush1.xpose.msra.mxu0 0.0
    %161 = vmatprep.subr.mxu0 0.0
    %162 = vmatpush1.xpose.msra.mxu0 0.0
    %163 = vmatprep.subr.mxu0 0.0
    %164 = vmatpush1.xpose.msra.mxu0 0.0
    %165 = vmatprep.subr.mxu0 0.0
    %166 = vmatpush1.xpose.msra.mxu0 0.0
    %167 = vmatprep.subr.mxu0 0.0
    %168 = vmatpush1.xpose.msra.mxu0 0.0
    %169 = vmatprep.subr.mxu0 0.0
    %170 = vmatpush1.xpose.msra.mxu0 0.0
    %171 = vmatprep.subr.mxu0 0.0
    %172 = vmatpush1.xpose.msra.mxu0 0.0
    %173 = vmatprep.subr.mxu0 0.0
    %174 = vmatpush1.xpose.msra.mxu0 0.0
    %175 = vmatprep.subr.mxu0 0.0
    %176 = vmatpush1.xpose.msra.mxu0 0.0
    %177 = vmatprep.subr.mxu0 0.0
    %178 = vmatpush1.xpose.msra.mxu0 0.0
    %179 = vmatprep.subr.mxu0 0.0
    %180 = vmatpush1.xpose.msra.mxu0 0.0
    %181 = vmatprep.subr.mxu0 0.0
    %182 = vmatpush1.xpose.msra.mxu0 0.0
    %183 = vmatprep.subr.mxu0 0.0
    %184 = vmatpush1.xpose.msra.mxu0 0.0
    %185 = vmatprep.subr.mxu0 0.0
    %186 = vmatpush1.xpose.msra.mxu0 0.0
    %187 = vmatprep.subr.mxu0 0.0
    %188 = vmatpush1.xpose.msra.mxu0 0.0
    %189 = vmatprep.subr.mxu0 0.0
    %190 = vmatpush1.xpose.msra.mxu0 0.0
    %191 = vmatprep.subr.mxu0 0.0
    %192 = vmatpush1.xpose.msra.mxu0 0.0
    %193 = vmatprep.subr.mxu0 0.0
    %194 = vmatpush1.xpose.msra.mxu0 0.0
    %195 = vmatprep.mubr.f32.mxu0 0.0
    %196 = vmatmul.mubr.f32.gmra.mrb[0].mxu0 %v126
    %v197 = vpop.f32.mrb[0].mxu0
    %v198 = vadd.f32 %v122, %v197
    %v199 = vpop.f32.mrb[0].mxu0
    %200 = vdwg.mxu0
    %vm201 = vcmask 39936
    %202 = vst.msk [vmem:[#allocation2] sm:$0xff] %vm201, %v198
    // Predicated region
    $region22: #{mlp_forward.1} parent=1 // pred_check
      _
    $region23: #{mlp_forward.1} parent=1 // pred_check_branch
      %204 = sbr.rel (0) target = $region25
    $region24: #{mlp_forward.1} parent=1 // pred_region
      %s206 = ssub.s32 128, 128
      %207 = vsyncadd [#allocation3], %s206
      %s209 = sshll.u32 [#allocation2], 4
      %s210 = int_to_ptr.vmem [resolvable:$true] %s209
      %212 = dma.vmem_to_hbm [thread:$0]  %s210, 128, %s5, [#allocation3]
    $region25: #{mlp_forward.1} parent=1 // pred_fallthru
      _
    // Predicated region
    $region26: #{mlp_forward.1} parent=1 // pred_check
      _
    $region27: #{mlp_forward.1} parent=1 // pred_check_branch
      %214 = sbr.rel (0) target = $region29
    $region28: #{mlp_forward.1} parent=1 // pred_region
      %215 = dma.done [#allocation3], 128
    $region29: #{mlp_forward.1} parent=1 // pred_fallthru
      _
    %216 = vsyncpa [#allocation3], 1

</llo_original>
